<compile_context>
chip_gen: v7x
topology: tpu7x:2x2x1
jax: 0.10.0
libtpu: 0.0.40
codegen_flags: <defaults>
</compile_context>

<pallas_src>
import jax
import jax.numpy as jnp
from jax.experimental import pallas as pl
from jax.experimental.pallas import tpu as pltpu


def _round_up(n, m):
    return ((n + m - 1) // m) * m


def _linear_kernel_lane_dense(x_ref, w_ref, o_ref):
    # x_ref: (TB, D) tile, w_ref: (1, D), o_ref: (1, TB).
    # VPU elementwise multiply (w broadcast over sublanes) + XLU lane reduce.
    row_sums = jnp.sum(x_ref[...] * w_ref[...], axis=-1)  # (TB,)
    # Relayout sublane-vector -> lane-major row so the store is a dense vst
    # into a compact (1, TB) block instead of masked single-lane stores.
    o_ref[...] = row_sums.reshape(1, -1).astype(o_ref.dtype)


def _linear_kernel_col(x_ref, w_ref, o_ref):
    # Fallback kernel: (TB, 1) column output (always lowers; lane-sparse
    # stores). Only used if the lane-dense relayout is rejected by Mosaic.
    o_ref[...] = jnp.sum(
        x_ref[...] * w_ref[...], axis=-1, keepdims=True
    ).astype(o_ref.dtype)


def _tile_rows(B, block_b):
    """Pick the batch tile size (rows per grid step)."""
    if B <= 256:
        # Single tile == full array: no (8,128) divisibility constraints and
        # no ragged block. At this size launch/DMA fixed cost dominates.
        return B
    # Multi-tile: tile must be a multiple of 128 so that (a) the x block's
    # sublane dim satisfies the (8,.) rule and (b) the lane-dense (1, tb)
    # output block satisfies the (.,128) rule. Cap at ~ceil(B/2) so the grid
    # has >= 2 steps and the "parallel" batch axis can use both TCs on v7x.
    block_b = max(128, _round_up(block_b, 128))
    return min(block_b, _round_up(pl.cdiv(B, 2), 128))


def _call_lane_dense(x, w, tb):
    B, D = x.shape
    grid = (pl.cdiv(B, tb),)
    y_row = pl.pallas_call(
        _linear_kernel_lane_dense,
        out_shape=jax.ShapeDtypeStruct((1, B), x.dtype),
        grid_spec=pltpu.PrefetchScalarGridSpec(
            num_scalar_prefetch=0,
            grid=grid,
            in_specs=[
                # x: batch-tiled rows, full D (D equals the array dim so the
                # (8,128) lane rule is satisfied).
                pl.BlockSpec((tb, D), lambda i: (i, 0)),
                # w: same (1, D) block every step (Pallas skips re-DMA).
                pl.BlockSpec((1, D), lambda i: (0, 0)),
            ],
            out_specs=pl.BlockSpec((1, tb), lambda i: (0, i)),
        ),
        compiler_params=pltpu.CompilerParams(
            # Independent batch tiles -> shard across TensorCores on v7x.
            dimension_semantics=("parallel",),
        ),
    )(x, w)
    # Output-only reshape (B*4 bytes): layout plumbing, not a pass over x.
    return y_row.reshape(B, 1)


def _call_col(x, w, tb):
    B, D = x.shape
    grid = (pl.cdiv(B, tb),)
    return pl.pallas_call(
        _linear_kernel_col,
        out_shape=jax.ShapeDtypeStruct((B, 1), x.dtype),
        grid_spec=pltpu.PrefetchScalarGridSpec(
            num_scalar_prefetch=0,
            grid=grid,
            in_specs=[
                pl.BlockSpec((tb, D), lambda i: (i, 0)),
                pl.BlockSpec((1, D), lambda i: (0, 0)),
            ],
            out_specs=pl.BlockSpec((tb, 1), lambda i: (i, 0)),
        ),
        compiler_params=pltpu.CompilerParams(
            dimension_semantics=("parallel",),
        ),
    )(x, w)


def linear_no_bias(x, w, *, block_b=2048):
    """y = x @ w.T  (nn.Linear(d, 1, bias=False) forward).

    x: (B, D) float32, w: (1, D) float32  ->  (B, 1) float32
    """
    B, D = x.shape
    assert w.shape == (1, D)
    tb = _tile_rows(B, block_b)
    try:
        return _call_lane_dense(x, w, tb)
    except Exception:
        # Lowering safety net: if this Mosaic version rejects the
        # sublane->lane relayout for the (1, TB) store, fall back to the
        # (correct, lane-sparse) column-output kernel.
        return _call_col(x, w, tb)


if __name__ == "__main__":
    key = jax.random.PRNGKey(0)
    kx, kw, kx2 = jax.random.split(key, 3)

    # Small shapes consistent with the module: batch=8, d=32.
    batch, d = 8, 32
    x = jax.random.normal(kx, (batch, d), dtype=jnp.float32)
    # Deterministic init matching nn.Linear weight shape (1, d):
    # uniform(-1/sqrt(d), 1/sqrt(d)) like PyTorch's default, seeded.
    bound = 1.0 / (d ** 0.5)
    w = jax.random.uniform(
        kw, (1, d), dtype=jnp.float32, minval=-bound, maxval=bound
    )

    y = linear_no_bias(x, w)
    jax.block_until_ready(y)

    y_ref = jnp.einsum("bd,od->bo", x, w, precision=jax.lax.Precision.HIGHEST)
    assert y.shape == (batch, 1)
    assert jnp.allclose(y, y_ref, atol=1e-5, rtol=1e-5)

    # Multi-tile + ragged-batch path (no wrapper-side padding): 3 tiles of
    # 128 rows covering B=300, last block partially out of bounds.
    big_b = 300
    x2 = jax.random.normal(kx2, (big_b, d), dtype=jnp.float32)
    y2 = linear_no_bias(x2, w, block_b=128)
    jax.block_until_ready(y2)
    y2_ref = jnp.einsum(
        "bd,od->bo", x2, w, precision=jax.lax.Precision.HIGHEST
    )
    assert y2.shape == (big_b, 1)
    assert jnp.allclose(y2, y2_ref, atol=1e-5, rtol=1e-5)

    print("KERNEL_OK")
</pallas_src>

<mosaic_0001>
module attributes {stable_mosaic.version = 11 : i64} {
  func.func @_linear_kernel_lane_dense(%arg0: i32, %arg1: memref<8x32xf32, #tpu.memory_space<vmem>>, %arg2: memref<1x32xf32, #tpu.memory_space<vmem>>, %arg3: memref<1x8xf32, #tpu.memory_space<vmem>>) attributes {dimension_semantics = [#tpu.dimension_semantics<parallel>], iteration_bounds = array<i64: 1>, scalar_prefetch = 0 : i64, scratch_operands = 0 : i64, tpu.core_type = #tpu.core_type<tc>, window_params = [{transform_indices = @transform_0, window_bounds = array<i64: 8, 32>}, {pipeline_mode = #tpu.pipeline_mode<synchronous>, transform_indices = @transform_1, window_bounds = array<i64: 1, 32>}, {transform_indices = @transform_2, window_bounds = array<i64: 1, 8>}]} {
    %c0 = arith.constant 0 : index
    %c0_0 = arith.constant 0 : index
    %0 = vector.load %arg1[%c0, %c0_0] : memref<8x32xf32, #tpu.memory_space<vmem>>, vector<8x32xf32>
    %c0_1 = arith.constant 0 : index
    %c0_2 = arith.constant 0 : index
    %1 = vector.load %arg2[%c0_1, %c0_2] : memref<1x32xf32, #tpu.memory_space<vmem>>, vector<1x32xf32>
    %2 = vector.broadcast %1 : vector<1x32xf32> to vector<8x32xf32>
    %3 = arith.mulf %0, %2 : vector<8x32xf32>
    %cst = arith.constant dense<0.000000e+00> : vector<8xf32>
    %4 = vector.multi_reduction <add>, %3, %cst [1] : vector<8x32xf32> to vector<8xf32>
    %5 = vector.shape_cast %4 : vector<8xf32> to vector<1x8xf32>
    %c0_3 = arith.constant 0 : index
    %c0_4 = arith.constant 0 : index
    %6 = vector.load %arg3[%c0_3, %c0_4] : memref<1x8xf32, #tpu.memory_space<vmem>>, vector<1x8xf32>
    tpu.vector_store %arg3[%c0_3, %c0_4], %5 {strides = array<i32>} : memref<1x8xf32, #tpu.memory_space<vmem>>, vector<1x8xf32>,
    return
  }
  func.func @transform_0(%arg0: i32) -> (i32, i32) {
    %c0_i32 = arith.constant 0 : i32
    %c0_i32_0 = arith.constant 0 : i32
    return %arg0, %c0_i32 : i32, i32
  }
  func.func @transform_1(%arg0: i32) -> (i32, i32) {
    %c0_i32 = arith.constant 0 : i32
    %c0_i32_0 = arith.constant 0 : i32
    %c0_i32_1 = arith.constant 0 : i32
    return %c0_i32, %c0_i32_0 : i32, i32
  }
  func.func @transform_2(%arg0: i32) -> (i32, i32) {
    %c0_i32 = arith.constant 0 : i32
    %c0_i32_0 = arith.constant 0 : i32
    return %c0_i32, %arg0 : i32, i32
  }
}

module attributes {stable_mosaic.version = 11 : i64} {
  func.func @_linear_kernel_col(%arg0: i32, %arg1: memref<8x32xf32, #tpu.memory_space<vmem>>, %arg2: memref<1x32xf32, #tpu.memory_space<vmem>>, %arg3: memref<8x1xf32, #tpu.memory_space<vmem>>) attributes {dimension_semantics = [#tpu.dimension_semantics<parallel>], iteration_bounds = array<i64: 1>, scalar_prefetch = 0 : i64, scratch_operands = 0 : i64, tpu.core_type = #tpu.core_type<tc>, window_params = [{transform_indices = @transform_0, window_bounds = array<i64: 8, 32>}, {pipeline_mode = #tpu.pipeline_mode<synchronous>, transform_indices = @transform_1, window_bounds = array<i64: 1, 32>}, {transform_indices = @transform_2, window_bounds = array<i64: 8, 1>}]} {
    %c0 = arith.constant 0 : index
    %c0_0 = arith.constant 0 : index
    %0 = vector.load %arg1[%c0, %c0_0] : memref<8x32xf32, #tpu.memory_space<vmem>>, vector<8x32xf32>
    %c0_1 = arith.constant 0 : index
    %c0_2 = arith.constant 0 : index
    %1 = vector.load %arg2[%c0_1, %c0_2] : memref<1x32xf32, #tpu.memory_space<vmem>>, vector<1x32xf32>
    %2 = vector.broadcast %1 : vector<1x32xf32> to vector<8x32xf32>
    %3 = arith.mulf %0, %2 : vector<8x32xf32>
    %cst = arith.constant dense<0.000000e+00> : vector<8xf32>
    %4 = vector.multi_reduction <add>, %3, %cst [1] : vector<8x32xf32> to vector<8xf32>
    %5 = vector.shape_cast %4 : vector<8xf32> to vector<8x1xf32>
    %c0_3 = arith.constant 0 : index
    %c0_4 = arith.constant 0 : index
    %6 = vector.load %arg3[%c0_3, %c0_4] : memref<8x1xf32, #tpu.memory_space<vmem>>, vector<8x1xf32>
    tpu.vector_store %arg3[%c0_3, %c0_4], %5 {strides = array<i32>} : memref<8x1xf32, #tpu.memory_space<vmem>>, vector<8x1xf32>,
    return
  }
  func.func @transform_0(%arg0: i32) -> (i32, i32) {
    %c0_i32 = arith.constant 0 : i32
    %c0_i32_0 = arith.constant 0 : i32
    return %arg0, %c0_i32 : i32, i32
  }
  func.func @transform_1(%arg0: i32) -> (i32, i32) {
    %c0_i32 = arith.constant 0 : i32
    %c0_i32_0 = arith.constant 0 : i32
    %c0_i32_1 = arith.constant 0 : i32
    return %c0_i32, %c0_i32_0 : i32, i32
  }
  func.func @transform_2(%arg0: i32) -> (i32, i32) {
    %c0_i32 = arith.constant 0 : i32
    %c0_i32_0 = arith.constant 0 : i32
    return %arg0, %c0_i32 : i32, i32
  }
}

</mosaic_0001>

<llo_original>
// kernel: tpu_custom_call.1
$region0: #{tpu_custom_call.1}
  #allocation0 [shape = 'u32[]', space=smem, size = 0x4, offset = 0x4, fixed_abs, tag = 'smem constant byte address 0x4 - core index']
  #allocation1 [shape = 'u32[144,128]{1,0:T(1,128)}', space=vmem, size = 0x12000, scoped, tag = 'internal scratch']
  %s0 = inlined_call_operand.hbm [shape: f32[8,32], index: 0, kind: input, shape index: {}]
  %s1 = inlined_call_operand.vmem [shape: f32[1,32], index: 1, kind: input, shape index: {}]
  %s2 = inlined_call_operand.hbm [shape: f32[1,8], index: 2, kind: output, shape index: {}]
  %s3 = sld [smem:[#allocation0]]
  $region22: #{tpu_custom_call.1} parent=0
    _
  %s5 = ssub.s32 1, %s3
  %s6 = scalar_select 0, %s5, %s3
  $region1: #{tpu_custom_call.1} parent=0
    #allocation2 [shape = 'u8[4096]{0}', space=vmem, size = 0x1000, scoped, tag = 'input window, operand 0, single buffered']
    #allocation3 [shape = 's32[1]{0}', space=sflag, size = 0x4, scoped, tag = 'scoped memory for tpu_custom_call.1']
    #allocation4 [shape = 's32[1]{0}', space=sflag, size = 0x4, scoped, tag = 'scoped memory for tpu_custom_call.1']
    #allocation5 [shape = 'u8[512]{0}', space=vmem, size = 0x400, scoped, tag = 'output window, operand 0, single buffered']
    %7 = vsyncpa [#allocation3], 0
    %8 = vsyncpa [#allocation4], 0
    // Predicated region
    $region2: #{tpu_custom_call.1} parent=1 // pred_check
      _
    $region3: #{tpu_custom_call.1} parent=1 // pred_check_branch
      %10 = sbr.rel (0) target = $region5
    $region4: #{tpu_custom_call.1} parent=1 // pred_region
      %s12 = ssub.s32 128, 128
      %13 = vsyncadd [#allocation3], %s12
      %s15 = sshll.u32 [#allocation2], 4
      %s16 = int_to_ptr.vmem [resolvable:$true] %s15
      %18 = dma.hbm_to_vmem [thread:$0]  %s0, 128, %s16, [#allocation3]
    $region5: #{tpu_custom_call.1} parent=1 // pred_fallthru
      _
    // Predicated region
    $region6: #{tpu_custom_call.1} parent=1 // pred_check
      _
    $region7: #{tpu_custom_call.1} parent=1 // pred_check_branch
      %20 = sbr.rel (0) target = $region9
    $region8: #{tpu_custom_call.1} parent=1 // pred_region
      _
    $region9: #{tpu_custom_call.1} parent=1 // pred_fallthru
      _
    // Predicated region
    $region10: #{tpu_custom_call.1} parent=1 // pred_check
      _
    $region11: #{tpu_custom_call.1} parent=1 // pred_check_branch
      %22 = sbr.rel (0) target = $region13
    $region12: #{tpu_custom_call.1} parent=1 // pred_region
      %23 = dma.done [#allocation3], 128
    $region13: #{tpu_custom_call.1} parent=1 // pred_fallthru
      _
    %v24 = vld [vmem:[#allocation2] sm:$0xff]
    %v25 = vld [vmem:[%s1] sm:$0x1]
    %v27 = vlaneseq
    %v28 = vshrl.u32 %v27, 7
    %v29 = vsub.s32 0, %v28
    %v30 = vrot.slane %v25, %v29
    %v32 = vmul.f32 %v24, %v30
    %vm33 = vcmask 261120
    %v34 = vsel %vm33, %v32, 0.0
    %35 = vadd.xlane.f32.xlu0 %v34
    %v36 = vpop.xlane.xlu0 %35
    %v38 = vlaneseq
    %v39 = vand.u32 %v38, 127
    %v40 = vlaneseq
    %v41 = vshrl.u32 %v40, 7
    %v42 = vsub.s32 %v39, %v41
    %v43 = vrot.slane %v36, %v42
    %vm45 = vcmask 57344
    %46 = vst.msk [vmem:[#allocation5] sm:$0x1] %vm45, %v43
    // Predicated region
    $region14: #{tpu_custom_call.1} parent=1 // pred_check
      _
    $region15: #{tpu_custom_call.1} parent=1 // pred_check_branch
      %48 = sbr.rel (0) target = $region17
    $region16: #{tpu_custom_call.1} parent=1 // pred_region
      %s50 = ssub.s32 16, 16
      %51 = vsyncadd [#allocation4], %s50
      %s53 = sshll.u32 [#allocation5], 4
      %s54 = int_to_ptr.vmem [resolvable:$true] %s53
      %56 = dma.vmem_to_hbm [thread:$0]  %s54, 16, %s2, [#allocation4]
    $region17: #{tpu_custom_call.1} parent=1 // pred_fallthru
      _
    // Predicated region
    $region18: #{tpu_custom_call.1} parent=1 // pred_check
      _
    $region19: #{tpu_custom_call.1} parent=1 // pred_check_branch
      %58 = sbr.rel (0) target = $region21
    $region20: #{tpu_custom_call.1} parent=1 // pred_region
      %59 = dma.done [#allocation4], 16
    $region21: #{tpu_custom_call.1} parent=1 // pred_fallthru
      _
    %60 = vsyncpa [#allocation3], 1
    %61 = vsyncpa [#allocation4], 1

// kernel: tpu_custom_call.1
$region0: #{tpu_custom_call.1}
  #allocation0 [shape = 'u32[]', space=smem, size = 0x4, offset = 0x4, fixed_abs, tag = 'smem constant byte address 0x4 - core index']
  #allocation1 [shape = 'u32[144,128]{1,0:T(1,128)}', space=vmem, size = 0x12000, scoped, tag = 'internal scratch']
  %s0 = inlined_call_operand.hbm [shape: f32[8,32], index: 0, kind: input, shape index: {}]
  %s1 = inlined_call_operand.vmem [shape: f32[1,32], index: 1, kind: input, shape index: {}]
  %s2 = inlined_call_operand.vmem [shape: f32[8,1], index: 2, kind: output, shape index: {}]
  %s3 = sld [smem:[#allocation0]]
  $region22: #{tpu_custom_call.1} parent=0
    _
  %s5 = ssub.s32 1, %s3
  %s6 = scalar_select 0, %s5, %s3
  $region1: #{tpu_custom_call.1} parent=0
    #allocation2 [shape = 'u8[4096]{0}', space=vmem, size = 0x1000, scoped, tag = 'input window, operand 0, single buffered']
    #allocation3 [shape = 's32[1]{0}', space=sflag, size = 0x4, scoped, tag = 'scoped memory for tpu_custom_call.1']
    %7 = vsyncpa [#allocation3], 0
    // Predicated region
    $region2: #{tpu_custom_call.1} parent=1 // pred_check
      _
    $region3: #{tpu_custom_call.1} parent=1 // pred_check_branch
      %9 = sbr.rel (0) target = $region5
    $region4: #{tpu_custom_call.1} parent=1 // pred_region
      %s11 = ssub.s32 128, 128
      %12 = vsyncadd [#allocation3], %s11
      %s14 = sshll.u32 [#allocation2], 4
      %s15 = int_to_ptr.vmem [resolvable:$true] %s14
      %17 = dma.hbm_to_vmem [thread:$0]  %s0, 128, %s15, [#allocation3]
    $region5: #{tpu_custom_call.1} parent=1 // pred_fallthru
      _
    // Predicated region
    $region6: #{tpu_custom_call.1} parent=1 // pred_check
      _
    $region7: #{tpu_custom_call.1} parent=1 // pred_check_branch
      %19 = sbr.rel (0) target = $region9
    $region8: #{tpu_custom_call.1} parent=1 // pred_region
      _
    $region9: #{tpu_custom_call.1} parent=1 // pred_fallthru
      _
    // Predicated region
    $region10: #{tpu_custom_call.1} parent=1 // pred_check
      _
    $region11: #{tpu_custom_call.1} parent=1 // pred_check_branch
      %21 = sbr.rel (0) target = $region13
    $region12: #{tpu_custom_call.1} parent=1 // pred_region
      %22 = dma.done [#allocation3], 128
    $region13: #{tpu_custom_call.1} parent=1 // pred_fallthru
      _
    %v23 = vld [vmem:[#allocation2] sm:$0xff]
    %v24 = vld [vmem:[%s1] sm:$0x1]
    %v26 = vlaneseq
    %v27 = vshrl.u32 %v26, 7
    %v28 = vsub.s32 0, %v27
    %v29 = vrot.slane %v24, %v28
    %v31 = vmul.f32 %v23, %v29
    %vm32 = vcmask 261120
    %v33 = vsel %vm32, %v31, 0.0
    %34 = vadd.xlane.f32.xlu0 %v33
    %v35 = vpop.xlane.xlu0 %34
    %vm36 = vcmask 7168
    %37 = vst.msk [vmem:[%s2] sm:$0xff] %vm36, %v35
    // Predicated region
    $region14: #{tpu_custom_call.1} parent=1 // pred_check
      _
    $region15: #{tpu_custom_call.1} parent=1 // pred_check_branch
      %39 = sbr.rel (0) target = $region17
    $region16: #{tpu_custom_call.1} parent=1 // pred_region
      _
    $region17: #{tpu_custom_call.1} parent=1 // pred_fallthru
      _
    // Predicated region
    $region18: #{tpu_custom_call.1} parent=1 // pred_check
      _
    $region19: #{tpu_custom_call.1} parent=1 // pred_check_branch
      %41 = sbr.rel (0) target = $region21
    $region20: #{tpu_custom_call.1} parent=1 // pred_region
      _
    $region21: #{tpu_custom_call.1} parent=1 // pred_fallthru
      _
    %42 = vsyncpa [#allocation3], 1

</llo_original>
